<compile_context>
chip_gen: v7x
topology: tpu7x:2x2x1
jax: 0.10.0
libtpu: 0.0.40
codegen_flags: <defaults>
</compile_context>

<pallas_src>
import jax
import jax.numpy as jnp
from jax.experimental import pallas as pl
from jax.experimental.pallas import tpu as pltpu


def _patch_merge_kernel(x_ref, w_ref, b_ref, o_ref):
    # x_ref: (TM, K) tile of flattened patches (K = C_in * f^3)
    # w_ref: (K, N)  conv weight as a matrix (resident across all grid steps)
    # b_ref: (1, N)  conv bias in f32 (added to the f32 accumulator pre-cast)
    # o_ref: (TM, N) output tile (channels-last already)
    h = jnp.dot(x_ref[...], w_ref[...], preferred_element_type=jnp.float32)
    o_ref[...] = (h + b_ref[...]).astype(o_ref.dtype)


def _round_up(v, m):
    return ((v + m - 1) // m) * m


def _vmem_capacity_bytes():
    """Per-core VMEM capacity; conservative v7x value if the query fails."""
    try:
        return int(pltpu.get_tpu_info().vmem_capacity_bytes)
    except Exception:
        return 64 << 20   # v7x has 64 MiB / TensorCore; v5e/v6e have 128 MiB


def _choose_tile_m(m, k, n, itemsize, *, sublane, buf_budget, target_bytes=4 << 20):
    """Row tile over the flattened B*(H/f)*(W/f)*(D/f) axis.

    Byte-based sizing: target ~4 MiB of x-tile per buffer (HBM-roofline plateau),
    capped so the double-buffered (x + out) tiles fit `buf_budget` (which already
    excludes the resident weight), rounded to the dtype-native sublane pack,
    preferring a tile that divides m exactly (avoids padded rows / extra HBM pass),
    and split into >=4 grid steps (2 per v7x TensorCore) only when tiles stay >=1 MiB.
    """
    rows_target = max(sublane, target_bytes // max(1, k * itemsize))
    rows_vmem = max(sublane, buf_budget // max(1, 2 * (k + n) * itemsize))
    tile = min(rows_target, rows_vmem, max(m, sublane))
    min_useful_rows = max(sublane, (1 << 20) // max(1, k * itemsize))
    if m // 4 >= min_useful_rows:                       # keep both v7x cores pipelined
        tile = min(tile, _round_up(pl.cdiv(m, 4), sublane))
    tile = max(sublane, (tile // sublane) * sublane)
    # Prefer an exact divisor of m (M is usually highly power-of-two factorable).
    t = tile
    lo = max(sublane, tile // 2)
    while t >= lo:
        if m % t == 0:
            return t
        t -= sublane
    return tile


def patch_merging_forward(x, w, b, *, downscaling_factor, tile_m=None):
    """x: (B, C_in, H, W, D); w: (C_out, C_in, f, f, f); b: (C_out,).

    Returns (B, H//f, W//f, D//f, C_out), matching
    rearrange(Conv3d(C_in, C_out, kernel=f, stride=f, padding=0)(x),
              'b c h w d -> b h w d c').
    Works for f32 or bf16 I/O; accumulation (and bias add) is always f32 in-kernel.
    """
    B, C_in, H, W, D = x.shape
    f = downscaling_factor
    C_out = w.shape[0]
    Ho, Wo, Do = H // f, W // f, D // f
    K = C_in * f * f * f
    M = B * Ho * Wo * Do
    dtype = x.dtype
    itemsize = jnp.dtype(dtype).itemsize
    sublane = {4: 8, 2: 16, 1: 32}.get(itemsize, 8)     # dtype-native sublane pack

    # --- patchify: pure layout op done wrapper-side (XLA transpose fusion) -------
    # TODO(synk): fold patch extraction into the kernel (Element index_map, or keep
    # activations channels-last upstream) to remove this extra HBM pass of x.
    # (B, C_in, Ho, f, Wo, f, Do, f) -> (B, Ho, Wo, Do, C_in, f, f, f) -> (M, K)
    xp = x.reshape(B, C_in, Ho, f, Wo, f, Do, f)
    xp = xp.transpose(0, 2, 4, 6, 1, 3, 5, 7).reshape(M, K)
    # Conv weight (C_out, C_in, f, f, f) flattens in the same (C_in, kh, kw, kd)
    # order as the patches, so (M,K)@(K,C_out) reproduces the stride==kernel conv.
    wm = w.reshape(C_out, K).T.astype(dtype)
    b2 = b.reshape(1, C_out).astype(jnp.float32)        # bias stays f32 in-kernel

    # --- tiling / VMEM budget (per-generation) ------------------------------------
    cap = _vmem_capacity_bytes()
    w_bytes = K * C_out * itemsize + C_out * 4          # single-buffered weight + f32 bias
    buf_budget = max(4 << 20, int(0.45 * cap) - w_bytes)
    if tile_m is None:
        tile_m = _choose_tile_m(M, K, C_out, itemsize,
                                sublane=sublane, buf_budget=buf_budget)
    tile_m = max(sublane, (min(tile_m, _round_up(M, sublane)) // sublane) * sublane)
    M_pad = _round_up(M, tile_m)
    if M_pad != M:                                      # keep every tile full -> unmasked stores
        xp = jnp.pad(xp, ((0, M_pad - M), (0, 0)))
    grid = (M_pad // tile_m,)

    vmem_needed = 2 * tile_m * (K + C_out) * itemsize + w_bytes
    vmem_limit = int(min(int(0.7 * cap), max(16 << 20, vmem_needed + (4 << 20))))

    cost = pl.CostEstimate(
        flops=2 * M * K * C_out,
        transcendentals=0,
        bytes_accessed=(M * K + M * C_out + K * C_out) * itemsize + C_out * 4,
    )

    def _run(resident_kwargs):
        w_spec = pl.BlockSpec((K, C_out), lambda i: (0, 0), **resident_kwargs)
        b_spec = pl.BlockSpec((1, C_out), lambda i: (0, 0), **resident_kwargs)
        return pl.pallas_call(
            _patch_merge_kernel,
            out_shape=jax.ShapeDtypeStruct((M_pad, C_out), dtype),
            grid_spec=pltpu.PrefetchScalarGridSpec(
                num_scalar_prefetch=0,
                grid=grid,
                in_specs=[
                    pl.BlockSpec((tile_m, K), lambda i: (i, 0)),   # patch tile
                    w_spec,                                        # weight (resident)
                    b_spec,                                        # bias   (resident)
                ],
                out_specs=pl.BlockSpec((tile_m, C_out), lambda i: (i, 0)),
            ),
            compiler_params=pltpu.CompilerParams(
                dimension_semantics=("parallel",),
                vmem_limit_bytes=vmem_limit,
            ),
            cost_estimate=cost,
        )(xp, wm, b2)

    try:
        # Weight/bias index_map is constant -> single-buffer them; halves their
        # resident VMEM footprint (biggest payoff on v7x's 64 MiB VMEM).
        out = _run(dict(pipeline_mode=pl.Buffered(1)))
    except Exception:
        # Fallback for versions that reject Buffered(1): default 2-deep buffering
        # (costs one extra resident copy of the weight; still correct).
        out = _run({})

    if M_pad != M:
        out = out[:M]
    return out.reshape(B, Ho, Wo, Do, C_out)


if __name__ == "__main__":
    # Small shapes consistent with the module:
    # x (B, C_in, H, W, D) = (2, 4, 8, 8, 8), Conv3d(4 -> 32, kernel=stride=2)
    # => output (2, 4, 4, 4, 32); flattened GEMM is (128, 32) @ (32, 32).
    B, C_in, H, W, D = 2, 4, 8, 8, 8
    C_out, f = 32, 2
    K = C_in * f * f * f

    key = jax.random.PRNGKey(0)
    kx, kw, kb, kxi, kwi, kbi = jax.random.split(key, 6)

    def conv_ref(x, w, b):
        # Conv3d(kernel=stride=f, padding=0) + bias, then 'b c h w d -> b h w d c'.
        r = jax.lax.conv_general_dilated(
            x, w, window_strides=(f, f, f), padding="VALID",
            dimension_numbers=("NCHWD", "OIHWD", "NCHWD"),
            precision=jax.lax.Precision.HIGHEST,
        )
        return jnp.transpose(r, (0, 2, 3, 4, 1)) + b

    # --- exact check: integer-valued inputs stay exact even under the MXU's
    # bf16-pass f32 matmul, so this validates patch/weight layout + bias exactly.
    xi = jax.random.randint(kxi, (B, C_in, H, W, D), -3, 4).astype(jnp.float32)
    wi = jax.random.randint(kwi, (C_out, C_in, f, f, f), -2, 3).astype(jnp.float32)
    bi = jax.random.randint(kbi, (C_out,), -2, 3).astype(jnp.float32)
    out_i = patch_merging_forward(xi, wi, bi, downscaling_factor=f)
    jax.block_until_ready(out_i)
    assert out_i.shape == (B, H // f, W // f, D // f, C_out)
    assert out_i.dtype == xi.dtype
    assert jnp.allclose(out_i, conv_ref(xi, wi, bi), atol=1e-6, rtol=0.0)

    # --- float check: tolerance sized for TPU default-precision (bf16-pass) f32
    # matmul in the kernel vs the HIGHEST-precision XLA conv reference.
    x = jax.random.normal(kx, (B, C_in, H, W, D), dtype=jnp.float32)
    w = jax.random.normal(kw, (C_out, C_in, f, f, f), dtype=jnp.float32) / jnp.sqrt(K)
    b = jax.random.normal(kb, (C_out,), dtype=jnp.float32) * 0.01
    ref = conv_ref(x, w, b)
    out = patch_merging_forward(x, w, b, downscaling_factor=f)
    jax.block_until_ready(out)
    assert out.shape == ref.shape
    assert out.dtype == jnp.float32
    assert jnp.allclose(out, ref, atol=5e-2, rtol=5e-2)

    # --- bf16 I/O path (halves HBM traffic on this mem-bound kernel; accumulation
    # and bias add stay f32 in-kernel).
    out_bf16 = patch_merging_forward(
        x.astype(jnp.bfloat16), w.astype(jnp.bfloat16), b, downscaling_factor=f)
    jax.block_until_ready(out_bf16)
    assert out_bf16.dtype == jnp.bfloat16
    assert jnp.allclose(out_bf16.astype(jnp.float32), ref, atol=1.5e-1, rtol=1e-1)

    print("KERNEL_OK")
</pallas_src>

<mosaic_0001>
module attributes {stable_mosaic.version = 11 : i64} {
  func.func @_patch_merge_kernel(%arg0: i32, %arg1: memref<128x32xf32, #tpu.memory_space<vmem>>, %arg2: memref<32x32xf32, #tpu.memory_space<vmem>>, %arg3: memref<1x32xf32, #tpu.memory_space<vmem>>, %arg4: memref<128x32xf32, #tpu.memory_space<vmem>>) attributes {dimension_semantics = [#tpu.dimension_semantics<parallel>], iteration_bounds = array<i64: 1>, scalar_prefetch = 0 : i64, scratch_operands = 0 : i64, tpu.core_type = #tpu.core_type<tc>, window_params = [{transform_indices = @transform_0, window_bounds = array<i64: 128, 32>}, {pipeline_mode = #tpu.pipeline_mode<synchronous>, transform_indices = @transform_1, window_bounds = array<i64: 32, 32>}, {pipeline_mode = #tpu.pipeline_mode<synchronous>, transform_indices = @transform_2, window_bounds = array<i64: 1, 32>}, {transform_indices = @transform_3, window_bounds = array<i64: 128, 32>}]} {
    %c0 = arith.constant 0 : index
    %c0_0 = arith.constant 0 : index
    %0 = vector.load %arg1[%c0, %c0_0] : memref<128x32xf32, #tpu.memory_space<vmem>>, vector<128x32xf32>
    %c0_1 = arith.constant 0 : index
    %c0_2 = arith.constant 0 : index
    %1 = vector.load %arg2[%c0_1, %c0_2] : memref<32x32xf32, #tpu.memory_space<vmem>>, vector<32x32xf32>
    %cst = arith.constant dense<0.000000e+00> : vector<128x32xf32>
    %2 = tpu.matmul %0, %1, %cst {dimension_numbers = #tpu.dot_dimension_numbers<[1], [0], [0], [1], [0, 0, 1, 1], [], []>} : vector<128x32xf32>, vector<32x32xf32>, vector<128x32xf32> -> vector<128x32xf32>
    %c0_3 = arith.constant 0 : index
    %c0_4 = arith.constant 0 : index
    %3 = vector.load %arg3[%c0_3, %c0_4] : memref<1x32xf32, #tpu.memory_space<vmem>>, vector<1x32xf32>
    %4 = vector.broadcast %3 : vector<1x32xf32> to vector<128x32xf32>
    %5 = arith.addf %2, %4 : vector<128x32xf32>
    %c0_5 = arith.constant 0 : index
    %c0_6 = arith.constant 0 : index
    %6 = vector.load %arg4[%c0_5, %c0_6] : memref<128x32xf32, #tpu.memory_space<vmem>>, vector<128x32xf32>
    tpu.vector_store %arg4[%c0_5, %c0_6], %5 {strides = array<i32>} : memref<128x32xf32, #tpu.memory_space<vmem>>, vector<128x32xf32>,
    return
  }
  func.func @transform_0(%arg0: i32) -> (i32, i32) {
    %c0_i32 = arith.constant 0 : i32
    %c0_i32_0 = arith.constant 0 : i32
    return %arg0, %c0_i32 : i32, i32
  }
  func.func @transform_1(%arg0: i32) -> (i32, i32) {
    %c0_i32 = arith.constant 0 : i32
    %c0_i32_0 = arith.constant 0 : i32
    %c0_i32_1 = arith.constant 0 : i32
    return %c0_i32, %c0_i32_0 : i32, i32
  }
  func.func @transform_2(%arg0: i32) -> (i32, i32) {
    %c0_i32 = arith.constant 0 : i32
    %c0_i32_0 = arith.constant 0 : i32
    %c0_i32_1 = arith.constant 0 : i32
    return %c0_i32, %c0_i32_0 : i32, i32
  }
  func.func @transform_3(%arg0: i32) -> (i32, i32) {
    %c0_i32 = arith.constant 0 : i32
    %c0_i32_0 = arith.constant 0 : i32
    return %arg0, %c0_i32 : i32, i32
  }
}

module attributes {stable_mosaic.version = 11 : i64} {
  func.func @_patch_merge_kernel(%arg0: i32, %arg1: memref<128x32xf32, #tpu.memory_space<vmem>>, %arg2: memref<32x32xf32, #tpu.memory_space<vmem>>, %arg3: memref<1x32xf32, #tpu.memory_space<vmem>>, %arg4: memref<128x32xf32, #tpu.memory_space<vmem>>) attributes {dimension_semantics = [#tpu.dimension_semantics<parallel>], iteration_bounds = array<i64: 1>, scalar_prefetch = 0 : i64, scratch_operands = 0 : i64, tpu.core_type = #tpu.core_type<tc>, window_params = [{transform_indices = @transform_0, window_bounds = array<i64: 128, 32>}, {pipeline_mode = #tpu.pipeline_mode<synchronous>, transform_indices = @transform_1, window_bounds = array<i64: 32, 32>}, {pipeline_mode = #tpu.pipeline_mode<synchronous>, transform_indices = @transform_2, window_bounds = array<i64: 1, 32>}, {transform_indices = @transform_3, window_bounds = array<i64: 128, 32>}]} {
    %c0 = arith.constant 0 : index
    %c0_0 = arith.constant 0 : index
    %0 = vector.load %arg1[%c0, %c0_0] : memref<128x32xf32, #tpu.memory_space<vmem>>, vector<128x32xf32>
    %c0_1 = arith.constant 0 : index
    %c0_2 = arith.constant 0 : index
    %1 = vector.load %arg2[%c0_1, %c0_2] : memref<32x32xf32, #tpu.memory_space<vmem>>, vector<32x32xf32>
    %cst = arith.constant dense<0.000000e+00> : vector<128x32xf32>
    %2 = tpu.matmul %0, %1, %cst {dimension_numbers = #tpu.dot_dimension_numbers<[1], [0], [0], [1], [0, 0, 1, 1], [], []>} : vector<128x32xf32>, vector<32x32xf32>, vector<128x32xf32> -> vector<128x32xf32>
    %c0_3 = arith.constant 0 : index
    %c0_4 = arith.constant 0 : index
    %3 = vector.load %arg3[%c0_3, %c0_4] : memref<1x32xf32, #tpu.memory_space<vmem>>, vector<1x32xf32>
    %4 = vector.broadcast %3 : vector<1x32xf32> to vector<128x32xf32>
    %5 = arith.addf %2, %4 : vector<128x32xf32>
    %c0_5 = arith.constant 0 : index
    %c0_6 = arith.constant 0 : index
    %6 = vector.load %arg4[%c0_5, %c0_6] : memref<128x32xf32, #tpu.memory_space<vmem>>, vector<128x32xf32>
    tpu.vector_store %arg4[%c0_5, %c0_6], %5 {strides = array<i32>} : memref<128x32xf32, #tpu.memory_space<vmem>>, vector<128x32xf32>,
    return
  }
  func.func @transform_0(%arg0: i32) -> (i32, i32) {
    %c0_i32 = arith.constant 0 : i32
    %c0_i32_0 = arith.constant 0 : i32
    return %arg0, %c0_i32 : i32, i32
  }
  func.func @transform_1(%arg0: i32) -> (i32, i32) {
    %c0_i32 = arith.constant 0 : i32
    %c0_i32_0 = arith.constant 0 : i32
    %c0_i32_1 = arith.constant 0 : i32
    return %c0_i32, %c0_i32_0 : i32, i32
  }
  func.func @transform_2(%arg0: i32) -> (i32, i32) {
    %c0_i32 = arith.constant 0 : i32
    %c0_i32_0 = arith.constant 0 : i32
    %c0_i32_1 = arith.constant 0 : i32
    return %c0_i32, %c0_i32_0 : i32, i32
  }
  func.func @transform_3(%arg0: i32) -> (i32, i32) {
    %c0_i32 = arith.constant 0 : i32
    %c0_i32_0 = arith.constant 0 : i32
    return %arg0, %c0_i32 : i32, i32
  }
}

</mosaic_0001>

<llo_original>
// kernel: tpu_custom_call.1
$region0: #{tpu_custom_call.1}
  #allocation0 [shape = 'u32[]', space=smem, size = 0x4, offset = 0x4, fixed_abs, tag = 'smem constant byte address 0x4 - core index']
  #allocation1 [shape = 'u32[144,128]{1,0:T(1,128)}', space=vmem, size = 0x12000, scoped, tag = 'internal scratch']
  %s0 = inlined_call_operand.vmem [shape: f32[128,32], index: 0, kind: input, shape index: {}]
  %s1 = inlined_call_operand.vmem [shape: f32[32,32], index: 1, kind: input, shape index: {}]
  %s2 = inlined_call_operand.vmem [shape: f32[1,32], index: 2, kind: input, shape index: {}]
  %s3 = inlined_call_operand.vmem [shape: f32[128,32], index: 3, kind: output, shape index: {}]
  %s4 = sld [smem:[#allocation0]]
  $region22: #{tpu_custom_call.1} parent=0
    _
  %s6 = ssub.s32 1, %s4
  %s7 = scalar_select 0, %s6, %s4
  // Predicated region
  $region2: #{tpu_custom_call.1} parent=0 // pred_check
    _
  $region3: #{tpu_custom_call.1} parent=0 // pred_check_branch
    %9 = sbr.rel (0) target = $region5
  $region4: #{tpu_custom_call.1} parent=0 // pred_region
    _
  $region5: #{tpu_custom_call.1} parent=0 // pred_fallthru
    _
  // Predicated region
  $region6: #{tpu_custom_call.1} parent=0 // pred_check
    _
  $region7: #{tpu_custom_call.1} parent=0 // pred_check_branch
    %11 = sbr.rel (0) target = $region9
  $region8: #{tpu_custom_call.1} parent=0 // pred_region
    _
  $region9: #{tpu_custom_call.1} parent=0 // pred_fallthru
    _
  // Predicated region
  $region10: #{tpu_custom_call.1} parent=0 // pred_check
    _
  $region11: #{tpu_custom_call.1} parent=0 // pred_check_branch
    %13 = sbr.rel (0) target = $region13
  $region12: #{tpu_custom_call.1} parent=0 // pred_region
    _
  $region13: #{tpu_custom_call.1} parent=0 // pred_fallthru
    _
  %v14 = vld [vmem:[%s0] sm:$0xff]
  %v15 = vld [vmem:[%s0 + $0x8] sm:$0xff]
  %v16 = vld [vmem:[%s0 + $0x10] sm:$0xff]
  %v17 = vld [vmem:[%s0 + $0x18] sm:$0xff]
  %v18 = vld [vmem:[%s0 + $0x20] sm:$0xff]
  %v19 = vld [vmem:[%s0 + $0x28] sm:$0xff]
  %v20 = vld [vmem:[%s0 + $0x30] sm:$0xff]
  %v21 = vld [vmem:[%s0 + $0x38] sm:$0xff]
  %v22 = vld [vmem:[%s0 + $0x40] sm:$0xff]
  %v23 = vld [vmem:[%s0 + $0x48] sm:$0xff]
  %v24 = vld [vmem:[%s0 + $0x50] sm:$0xff]
  %v25 = vld [vmem:[%s0 + $0x58] sm:$0xff]
  %v26 = vld [vmem:[%s0 + $0x60] sm:$0xff]
  %v27 = vld [vmem:[%s0 + $0x68] sm:$0xff]
  %v28 = vld [vmem:[%s0 + $0x70] sm:$0xff]
  %v29 = vld [vmem:[%s0 + $0x78] sm:$0xff]
  %v30 = vld [vmem:[%s1] sm:$0xff]
  %v31 = vld [vmem:[%s1 + $0x8] sm:$0xff]
  %v32 = vld [vmem:[%s1 + $0x10] sm:$0xff]
  %v33 = vld [vmem:[%s1 + $0x18] sm:$0xff]
  %v34 = vld [vmem:[%s2] sm:$0x1]
  %v36 = vlaneseq
  %v37 = vshrl.u32 %v36, 7
  %v38 = vsub.s32 0, %v37
  %v39 = vrot.slane %v34, %v38
  %vm41 = vcmask 261120
  %v43 = vsel %vm41, %v14, 0
  %v46 = vsel %vm41, %v15, 0
  %v49 = vsel %vm41, %v16, 0
  %v52 = vsel %vm41, %v17, 0
  %v55 = vsel %vm41, %v18, 0
  %v58 = vsel %vm41, %v19, 0
  %v61 = vsel %vm41, %v20, 0
  %v64 = vsel %vm41, %v21, 0
  %v67 = vsel %vm41, %v22, 0
  %v70 = vsel %vm41, %v23, 0
  %v73 = vsel %vm41, %v24, 0
  %v76 = vsel %vm41, %v25, 0
  %v79 = vsel %vm41, %v26, 0
  %v82 = vsel %vm41, %v27, 0
  %v85 = vsel %vm41, %v28, 0
  %v88 = vsel %vm41, %v29, 0
  %90 = vmatprep.subr.mxu0 0.0
  %91 = vmatpush1.msra.mxu0 %v30
  %92 = vmatprep.subr.mxu0 0.0
  %93 = vmatpush1.msra.mxu0 %v31
  %94 = vmatprep.subr.mxu0 0.0
  %95 = vmatpush1.msra.mxu0 %v32
  %96 = vmatprep.subr.mxu0 0.0
  %97 = vmatpush1.msra.mxu0 %v33
  %98 = vmatprep.subr.mxu0 0.0
  %99 = vmatpush1.msra.mxu0 0.0
  %100 = vmatprep.subr.mxu0 0.0
  %101 = vmatpush1.msra.mxu0 0.0
  %102 = vmatprep.subr.mxu0 0.0
  %103 = vmatpush1.msra.mxu0 0.0
  %104 = vmatprep.subr.mxu0 0.0
  %105 = vmatpush1.msra.mxu0 0.0
  %106 = vmatprep.subr.mxu0 0.0
  %107 = vmatpush1.msra.mxu0 0.0
  %108 = vmatprep.subr.mxu0 0.0
  %109 = vmatpush1.msra.mxu0 0.0
  %110 = vmatprep.subr.mxu0 0.0
  %111 = vmatpush1.msra.mxu0 0.0
  %112 = vmatprep.subr.mxu0 0.0
  %113 = vmatpush1.msra.mxu0 0.0
  %114 = vmatprep.subr.mxu0 0.0
  %115 = vmatpush1.msra.mxu0 0.0
  %116 = vmatprep.subr.mxu0 0.0
  %117 = vmatpush1.msra.mxu0 0.0
  %118 = vmatprep.subr.mxu0 0.0
  %119 = vmatpush1.msra.mxu0 0.0
  %120 = vmatprep.subr.mxu0 0.0
  %121 = vmatpush1.msra.mxu0 0.0
  %122 = vmatprep.subr.mxu0 0.0
  %123 = vmatpush1.msra.mxu0 0.0
  %124 = vmatprep.subr.mxu0 0.0
  %125 = vmatpush1.msra.mxu0 0.0
  %126 = vmatprep.subr.mxu0 0.0
  %127 = vmatpush1.msra.mxu0 0.0
  %128 = vmatprep.subr.mxu0 0.0
  %129 = vmatpush1.msra.mxu0 0.0
  %130 = vmatprep.subr.mxu0 0.0
  %131 = vmatpush1.msra.mxu0 0.0
  %132 = vmatprep.subr.mxu0 0.0
  %133 = vmatpush1.msra.mxu0 0.0
  %134 = vmatprep.subr.mxu0 0.0
  %135 = vmatpush1.msra.mxu0 0.0
  %136 = vmatprep.subr.mxu0 0.0
  %137 = vmatpush1.msra.mxu0 0.0
  %138 = vmatprep.subr.mxu0 0.0
  %139 = vmatpush1.msra.mxu0 0.0
  %140 = vmatprep.subr.mxu0 0.0
  %141 = vmatpush1.msra.mxu0 0.0
  %142 = vmatprep.subr.mxu0 0.0
  %143 = vmatpush1.msra.mxu0 0.0
  %144 = vmatprep.subr.mxu0 0.0
  %145 = vmatpush1.msra.mxu0 0.0
  %146 = vmatprep.subr.mxu0 0.0
  %147 = vmatpush1.msra.mxu0 0.0
  %148 = vmatprep.subr.mxu0 0.0
  %149 = vmatpush1.msra.mxu0 0.0
  %150 = vmatprep.subr.mxu0 0.0
  %151 = vmatpush1.msra.mxu0 0.0
  %152 = vmatprep.subr.mxu0 0.0
  %153 = vmatpush1.msra.mxu0 0.0
  %154 = vmatprep.mubr.f32.mxu0 0.0
  %155 = vmatmul.mubr.f32.gmra.mrb[0].mxu0 %v43
  %v156 = vpop.f32.mrb[0].mxu0
  %v157 = vadd.f32 %v39, %v156
  %v158 = vpop.f32.mrb[0].mxu0
  %159 = vmatprep.mubr.f32.mxu0 0.0
  %160 = vmatmul.mubr.f32.gmra.mrb[0].mxu0 %v46
  %v161 = vpop.f32.mrb[0].mxu0
  %v162 = vadd.f32 %v39, %v161
  %v163 = vpop.f32.mrb[0].mxu0
  %164 = vmatprep.mubr.f32.mxu0 0.0
  %165 = vmatmul.mubr.f32.gmra.mrb[0].mxu0 %v49
  %v166 = vpop.f32.mrb[0].mxu0
  %v167 = vadd.f32 %v39, %v166
  %v168 = vpop.f32.mrb[0].mxu0
  %169 = vmatprep.mubr.f32.mxu0 0.0
  %170 = vmatmul.mubr.f32.gmra.mrb[0].mxu0 %v52
  %v171 = vpop.f32.mrb[0].mxu0
  %v172 = vadd.f32 %v39, %v171
  %v173 = vpop.f32.mrb[0].mxu0
  %174 = vmatprep.mubr.f32.mxu0 0.0
  %175 = vmatmul.mubr.f32.gmra.mrb[0].mxu0 %v55
  %v176 = vpop.f32.mrb[0].mxu0
  %v177 = vadd.f32 %v39, %v176
  %v178 = vpop.f32.mrb[0].mxu0
  %179 = vmatprep.mubr.f32.mxu0 0.0
  %180 = vmatmul.mubr.f32.gmra.mrb[0].mxu0 %v58
  %v181 = vpop.f32.mrb[0].mxu0
  %v182 = vadd.f32 %v39, %v181
  %v183 = vpop.f32.mrb[0].mxu0
  %184 = vmatprep.mubr.f32.mxu0 0.0
  %185 = vmatmul.mubr.f32.gmra.mrb[0].mxu0 %v61
  %v186 = vpop.f32.mrb[0].mxu0
  %v187 = vadd.f32 %v39, %v186
  %v188 = vpop.f32.mrb[0].mxu0
  %189 = vmatprep.mubr.f32.mxu0 0.0
  %190 = vmatmul.mubr.f32.gmra.mrb[0].mxu0 %v64
  %v191 = vpop.f32.mrb[0].mxu0
  %v192 = vadd.f32 %v39, %v191
  %v193 = vpop.f32.mrb[0].mxu0
  %194 = vmatprep.mubr.f32.mxu0 0.0
  %195 = vmatmul.mubr.f32.gmra.mrb[0].mxu0 %v67
  %v196 = vpop.f32.mrb[0].mxu0
  %v197 = vadd.f32 %v39, %v196
  %v198 = vpop.f32.mrb[0].mxu0
  %199 = vmatprep.mubr.f32.mxu0 0.0
  %200 = vmatmul.mubr.f32.gmra.mrb[0].mxu0 %v70
  %v201 = vpop.f32.mrb[0].mxu0
  %v202 = vadd.f32 %v39, %v201
  %v203 = vpop.f32.mrb[0].mxu0
  %204 = vmatprep.mubr.f32.mxu0 0.0
  %205 = vmatmul.mubr.f32.gmra.mrb[0].mxu0 %v73
  %v206 = vpop.f32.mrb[0].mxu0
  %v207 = vadd.f32 %v39, %v206
  %v208 = vpop.f32.mrb[0].mxu0
  %209 = vmatprep.mubr.f32.mxu0 0.0
  %210 = vmatmul.mubr.f32.gmra.mrb[0].mxu0 %v76
  %v211 = vpop.f32.mrb[0].mxu0
  %v212 = vadd.f32 %v39, %v211
  %v213 = vpop.f32.mrb[0].mxu0
  %214 = vmatprep.mubr.f32.mxu0 0.0
  %215 = vmatmul.mubr.f32.gmra.mrb[0].mxu0 %v79
  %v216 = vpop.f32.mrb[0].mxu0
  %v217 = vadd.f32 %v39, %v216
  %v218 = vpop.f32.mrb[0].mxu0
  %219 = vmatprep.mubr.f32.mxu0 0.0
  %220 = vmatmul.mubr.f32.gmra.mrb[0].mxu0 %v82
  %v221 = vpop.f32.mrb[0].mxu0
  %v222 = vadd.f32 %v39, %v221
  %v223 = vpop.f32.mrb[0].mxu0
  %224 = vmatprep.mubr.f32.mxu0 0.0
  %225 = vmatmul.mubr.f32.gmra.mrb[0].mxu0 %v85
  %v226 = vpop.f32.mrb[0].mxu0
  %v227 = vadd.f32 %v39, %v226
  %v228 = vpop.f32.mrb[0].mxu0
  %229 = vmatprep.mubr.f32.mxu0 0.0
  %230 = vmatmul.mubr.f32.gmra.mrb[0].mxu0 %v88
  %v231 = vpop.f32.mrb[0].mxu0
  %v232 = vadd.f32 %v39, %v231
  %v233 = vpop.f32.mrb[0].mxu0
  %234 = vdwg.mxu0
  %235 = vst.msk [vmem:[%s3] sm:$0xff] %vm41, %v157
  %236 = vst.msk [vmem:[%s3 + $0x8] sm:$0xff] %vm41, %v162
  %237 = vst.msk [vmem:[%s3 + $0x10] sm:$0xff] %vm41, %v167
  %238 = vst.msk [vmem:[%s3 + $0x18] sm:$0xff] %vm41, %v172
  %239 = vst.msk [vmem:[%s3 + $0x20] sm:$0xff] %vm41, %v177
  %240 = vst.msk [vmem:[%s3 + $0x28] sm:$0xff] %vm41, %v182
  %241 = vst.msk [vmem:[%s3 + $0x30] sm:$0xff] %vm41, %v187
  %242 = vst.msk [vmem:[%s3 + $0x38] sm:$0xff] %vm41, %v192
  %243 = vst.msk [vmem:[%s3 + $0x40] sm:$0xff] %vm41, %v197
  %244 = vst.msk [vmem:[%s3 + $0x48] sm:$0xff] %vm41, %v202
  %245 = vst.msk [vmem:[%s3 + $0x50] sm:$0xff] %vm41, %v207
  %246 = vst.msk [vmem:[%s3 + $0x58] sm:$0xff] %vm41, %v212
  %247 = vst.msk [vmem:[%s3 + $0x60] sm:$0xff] %vm41, %v217
  %248 = vst.msk [vmem:[%s3 + $0x68] sm:$0xff] %vm41, %v222
  %249 = vst.msk [vmem:[%s3 + $0x70] sm:$0xff] %vm41, %v227
  %250 = vst.msk [vmem:[%s3 + $0x78] sm:$0xff] %vm41, %v232
  // Predicated region
  $region14: #{tpu_custom_call.1} parent=0 // pred_check
    _
  $region15: #{tpu_custom_call.1} parent=0 // pred_check_branch
    %252 = sbr.rel (0) target = $region17
  $region16: #{tpu_custom_call.1} parent=0 // pred_region
    _
  $region17: #{tpu_custom_call.1} parent=0 // pred_fallthru
    _
  // Predicated region
  $region18: #{tpu_custom_call.1} parent=0 // pred_check
    _
  $region19: #{tpu_custom_call.1} parent=0 // pred_check_branch
    %254 = sbr.rel (0) target = $region21
  $region20: #{tpu_custom_call.1} parent=0 // pred_region
    _
  $region21: #{tpu_custom_call.1} parent=0 // pred_fallthru
    _

// kernel: tpu_custom_call.1
$region0: #{tpu_custom_call.1}
  #allocation0 [shape = 'u32[]', space=smem, size = 0x4, offset = 0x4, fixed_abs, tag = 'smem constant byte address 0x4 - core index']
  #allocation1 [shape = 'u32[144,128]{1,0:T(1,128)}', space=vmem, size = 0x12000, scoped, tag = 'internal scratch']
  %s0 = inlined_call_operand.vmem [shape: f32[128,32], index: 0, kind: input, shape index: {}]
  %s1 = inlined_call_operand.vmem [shape: f32[32,32], index: 1, kind: input, shape index: {}]
  %s2 = inlined_call_operand.vmem [shape: f32[1,32], index: 2, kind: input, shape index: {}]
  %s3 = inlined_call_operand.vmem [shape: f32[128,32], index: 3, kind: output, shape index: {}]
  %s4 = sld [smem:[#allocation0]]
  $region22: #{tpu_custom_call.1} parent=0
    _
  %s6 = ssub.s32 1, %s4
  %s7 = scalar_select 0, %s6, %s4
  // Predicated region
  $region2: #{tpu_custom_call.1} parent=0 // pred_check
    _
  $region3: #{tpu_custom_call.1} parent=0 // pred_check_branch
    %9 = sbr.rel (0) target = $region5
  $region4: #{tpu_custom_call.1} parent=0 // pred_region
    _
  $region5: #{tpu_custom_call.1} parent=0 // pred_fallthru
    _
  // Predicated region
  $region6: #{tpu_custom_call.1} parent=0 // pred_check
    _
  $region7: #{tpu_custom_call.1} parent=0 // pred_check_branch
    %11 = sbr.rel (0) target = $region9
  $region8: #{tpu_custom_call.1} parent=0 // pred_region
    _
  $region9: #{tpu_custom_call.1} parent=0 // pred_fallthru
    _
  // Predicated region
  $region10: #{tpu_custom_call.1} parent=0 // pred_check
    _
  $region11: #{tpu_custom_call.1} parent=0 // pred_check_branch
    %13 = sbr.rel (0) target = $region13
  $region12: #{tpu_custom_call.1} parent=0 // pred_region
    _
  $region13: #{tpu_custom_call.1} parent=0 // pred_fallthru
    _
  %v14 = vld [vmem:[%s0] sm:$0xff]
  %v15 = vld [vmem:[%s0 + $0x8] sm:$0xff]
  %v16 = vld [vmem:[%s0 + $0x10] sm:$0xff]
  %v17 = vld [vmem:[%s0 + $0x18] sm:$0xff]
  %v18 = vld [vmem:[%s0 + $0x20] sm:$0xff]
  %v19 = vld [vmem:[%s0 + $0x28] sm:$0xff]
  %v20 = vld [vmem:[%s0 + $0x30] sm:$0xff]
  %v21 = vld [vmem:[%s0 + $0x38] sm:$0xff]
  %v22 = vld [vmem:[%s0 + $0x40] sm:$0xff]
  %v23 = vld [vmem:[%s0 + $0x48] sm:$0xff]
  %v24 = vld [vmem:[%s0 + $0x50] sm:$0xff]
  %v25 = vld [vmem:[%s0 + $0x58] sm:$0xff]
  %v26 = vld [vmem:[%s0 + $0x60] sm:$0xff]
  %v27 = vld [vmem:[%s0 + $0x68] sm:$0xff]
  %v28 = vld [vmem:[%s0 + $0x70] sm:$0xff]
  %v29 = vld [vmem:[%s0 + $0x78] sm:$0xff]
  %v30 = vld [vmem:[%s1] sm:$0xff]
  %v31 = vld [vmem:[%s1 + $0x8] sm:$0xff]
  %v32 = vld [vmem:[%s1 + $0x10] sm:$0xff]
  %v33 = vld [vmem:[%s1 + $0x18] sm:$0xff]
  %v34 = vld [vmem:[%s2] sm:$0x1]
  %v36 = vlaneseq
  %v37 = vshrl.u32 %v36, 7
  %v38 = vsub.s32 0, %v37
  %v39 = vrot.slane %v34, %v38
  %vm41 = vcmask 261120
  %v43 = vsel %vm41, %v14, 0
  %v46 = vsel %vm41, %v15, 0
  %v49 = vsel %vm41, %v16, 0
  %v52 = vsel %vm41, %v17, 0
  %v55 = vsel %vm41, %v18, 0
  %v58 = vsel %vm41, %v19, 0
  %v61 = vsel %vm41, %v20, 0
  %v64 = vsel %vm41, %v21, 0
  %v67 = vsel %vm41, %v22, 0
  %v70 = vsel %vm41, %v23, 0
  %v73 = vsel %vm41, %v24, 0
  %v76 = vsel %vm41, %v25, 0
  %v79 = vsel %vm41, %v26, 0
  %v82 = vsel %vm41, %v27, 0
  %v85 = vsel %vm41, %v28, 0
  %v88 = vsel %vm41, %v29, 0
  %90 = vmatprep.subr.mxu0 0.0
  %91 = vmatpush1.msra.mxu0 %v30
  %92 = vmatprep.subr.mxu0 0.0
  %93 = vmatpush1.msra.mxu0 %v31
  %94 = vmatprep.subr.mxu0 0.0
  %95 = vmatpush1.msra.mxu0 %v32
  %96 = vmatprep.subr.mxu0 0.0
  %97 = vmatpush1.msra.mxu0 %v33
  %98 = vmatprep.subr.mxu0 0.0
  %99 = vmatpush1.msra.mxu0 0.0
  %100 = vmatprep.subr.mxu0 0.0
  %101 = vmatpush1.msra.mxu0 0.0
  %102 = vmatprep.subr.mxu0 0.0
  %103 = vmatpush1.msra.mxu0 0.0
  %104 = vmatprep.subr.mxu0 0.0
  %105 = vmatpush1.msra.mxu0 0.0
  %106 = vmatprep.subr.mxu0 0.0
  %107 = vmatpush1.msra.mxu0 0.0
  %108 = vmatprep.subr.mxu0 0.0
  %109 = vmatpush1.msra.mxu0 0.0
  %110 = vmatprep.subr.mxu0 0.0
  %111 = vmatpush1.msra.mxu0 0.0
  %112 = vmatprep.subr.mxu0 0.0
  %113 = vmatpush1.msra.mxu0 0.0
  %114 = vmatprep.subr.mxu0 0.0
  %115 = vmatpush1.msra.mxu0 0.0
  %116 = vmatprep.subr.mxu0 0.0
  %117 = vmatpush1.msra.mxu0 0.0
  %118 = vmatprep.subr.mxu0 0.0
  %119 = vmatpush1.msra.mxu0 0.0
  %120 = vmatprep.subr.mxu0 0.0
  %121 = vmatpush1.msra.mxu0 0.0
  %122 = vmatprep.subr.mxu0 0.0
  %123 = vmatpush1.msra.mxu0 0.0
  %124 = vmatprep.subr.mxu0 0.0
  %125 = vmatpush1.msra.mxu0 0.0
  %126 = vmatprep.subr.mxu0 0.0
  %127 = vmatpush1.msra.mxu0 0.0
  %128 = vmatprep.subr.mxu0 0.0
  %129 = vmatpush1.msra.mxu0 0.0
  %130 = vmatprep.subr.mxu0 0.0
  %131 = vmatpush1.msra.mxu0 0.0
  %132 = vmatprep.subr.mxu0 0.0
  %133 = vmatpush1.msra.mxu0 0.0
  %134 = vmatprep.subr.mxu0 0.0
  %135 = vmatpush1.msra.mxu0 0.0
  %136 = vmatprep.subr.mxu0 0.0
  %137 = vmatpush1.msra.mxu0 0.0
  %138 = vmatprep.subr.mxu0 0.0
  %139 = vmatpush1.msra.mxu0 0.0
  %140 = vmatprep.subr.mxu0 0.0
  %141 = vmatpush1.msra.mxu0 0.0
  %142 = vmatprep.subr.mxu0 0.0
  %143 = vmatpush1.msra.mxu0 0.0
  %144 = vmatprep.subr.mxu0 0.0
  %145 = vmatpush1.msra.mxu0 0.0
  %146 = vmatprep.subr.mxu0 0.0
  %147 = vmatpush1.msra.mxu0 0.0
  %148 = vmatprep.subr.mxu0 0.0
  %149 = vmatpush1.msra.mxu0 0.0
  %150 = vmatprep.subr.mxu0 0.0
  %151 = vmatpush1.msra.mxu0 0.0
  %152 = vmatprep.subr.mxu0 0.0
  %153 = vmatpush1.msra.mxu0 0.0
  %154 = vmatprep.mubr.f32.mxu0 0.0
  %155 = vmatmul.mubr.f32.gmra.mrb[0].mxu0 %v43
  %v156 = vpop.f32.mrb[0].mxu0
  %v157 = vadd.f32 %v39, %v156
  %v158 = vpop.f32.mrb[0].mxu0
  %159 = vmatprep.mubr.f32.mxu0 0.0
  %160 = vmatmul.mubr.f32.gmra.mrb[0].mxu0 %v46
  %v161 = vpop.f32.mrb[0].mxu0
  %v162 = vadd.f32 %v39, %v161
  %v163 = vpop.f32.mrb[0].mxu0
  %164 = vmatprep.mubr.f32.mxu0 0.0
  %165 = vmatmul.mubr.f32.gmra.mrb[0].mxu0 %v49
  %v166 = vpop.f32.mrb[0].mxu0
  %v167 = vadd.f32 %v39, %v166
  %v168 = vpop.f32.mrb[0].mxu0
  %169 = vmatprep.mubr.f32.mxu0 0.0
  %170 = vmatmul.mubr.f32.gmra.mrb[0].mxu0 %v52
  %v171 = vpop.f32.mrb[0].mxu0
  %v172 = vadd.f32 %v39, %v171
  %v173 = vpop.f32.mrb[0].mxu0
  %174 = vmatprep.mubr.f32.mxu0 0.0
  %175 = vmatmul.mubr.f32.gmra.mrb[0].mxu0 %v55
  %v176 = vpop.f32.mrb[0].mxu0
  %v177 = vadd.f32 %v39, %v176
  %v178 = vpop.f32.mrb[0].mxu0
  %179 = vmatprep.mubr.f32.mxu0 0.0
  %180 = vmatmul.mubr.f32.gmra.mrb[0].mxu0 %v58
  %v181 = vpop.f32.mrb[0].mxu0
  %v182 = vadd.f32 %v39, %v181
  %v183 = vpop.f32.mrb[0].mxu0
  %184 = vmatprep.mubr.f32.mxu0 0.0
  %185 = vmatmul.mubr.f32.gmra.mrb[0].mxu0 %v61
  %v186 = vpop.f32.mrb[0].mxu0
  %v187 = vadd.f32 %v39, %v186
  %v188 = vpop.f32.mrb[0].mxu0
  %189 = vmatprep.mubr.f32.mxu0 0.0
  %190 = vmatmul.mubr.f32.gmra.mrb[0].mxu0 %v64
  %v191 = vpop.f32.mrb[0].mxu0
  %v192 = vadd.f32 %v39, %v191
  %v193 = vpop.f32.mrb[0].mxu0
  %194 = vmatprep.mubr.f32.mxu0 0.0
  %195 = vmatmul.mubr.f32.gmra.mrb[0].mxu0 %v67
  %v196 = vpop.f32.mrb[0].mxu0
  %v197 = vadd.f32 %v39, %v196
  %v198 = vpop.f32.mrb[0].mxu0
  %199 = vmatprep.mubr.f32.mxu0 0.0
  %200 = vmatmul.mubr.f32.gmra.mrb[0].mxu0 %v70
  %v201 = vpop.f32.mrb[0].mxu0
  %v202 = vadd.f32 %v39, %v201
  %v203 = vpop.f32.mrb[0].mxu0
  %204 = vmatprep.mubr.f32.mxu0 0.0
  %205 = vmatmul.mubr.f32.gmra.mrb[0].mxu0 %v73
  %v206 = vpop.f32.mrb[0].mxu0
  %v207 = vadd.f32 %v39, %v206
  %v208 = vpop.f32.mrb[0].mxu0
  %209 = vmatprep.mubr.f32.mxu0 0.0
  %210 = vmatmul.mubr.f32.gmra.mrb[0].mxu0 %v76
  %v211 = vpop.f32.mrb[0].mxu0
  %v212 = vadd.f32 %v39, %v211
  %v213 = vpop.f32.mrb[0].mxu0
  %214 = vmatprep.mubr.f32.mxu0 0.0
  %215 = vmatmul.mubr.f32.gmra.mrb[0].mxu0 %v79
  %v216 = vpop.f32.mrb[0].mxu0
  %v217 = vadd.f32 %v39, %v216
  %v218 = vpop.f32.mrb[0].mxu0
  %219 = vmatprep.mubr.f32.mxu0 0.0
  %220 = vmatmul.mubr.f32.gmra.mrb[0].mxu0 %v82
  %v221 = vpop.f32.mrb[0].mxu0
  %v222 = vadd.f32 %v39, %v221
  %v223 = vpop.f32.mrb[0].mxu0
  %224 = vmatprep.mubr.f32.mxu0 0.0
  %225 = vmatmul.mubr.f32.gmra.mrb[0].mxu0 %v85
  %v226 = vpop.f32.mrb[0].mxu0
  %v227 = vadd.f32 %v39, %v226
  %v228 = vpop.f32.mrb[0].mxu0
  %229 = vmatprep.mubr.f32.mxu0 0.0
  %230 = vmatmul.mubr.f32.gmra.mrb[0].mxu0 %v88
  %v231 = vpop.f32.mrb[0].mxu0
  %v232 = vadd.f32 %v39, %v231
  %v233 = vpop.f32.mrb[0].mxu0
  %234 = vdwg.mxu0
  %235 = vst.msk [vmem:[%s3] sm:$0xff] %vm41, %v157
  %236 = vst.msk [vmem:[%s3 + $0x8] sm:$0xff] %vm41, %v162
  %237 = vst.msk [vmem:[%s3 + $0x10] sm:$0xff] %vm41, %v167
  %238 = vst.msk [vmem:[%s3 + $0x18] sm:$0xff] %vm41, %v172
  %239 = vst.msk [vmem:[%s3 + $0x20] sm:$0xff] %vm41, %v177
  %240 = vst.msk [vmem:[%s3 + $0x28] sm:$0xff] %vm41, %v182
  %241 = vst.msk [vmem:[%s3 + $0x30] sm:$0xff] %vm41, %v187
  %242 = vst.msk [vmem:[%s3 + $0x38] sm:$0xff] %vm41, %v192
  %243 = vst.msk [vmem:[%s3 + $0x40] sm:$0xff] %vm41, %v197
  %244 = vst.msk [vmem:[%s3 + $0x48] sm:$0xff] %vm41, %v202
  %245 = vst.msk [vmem:[%s3 + $0x50] sm:$0xff] %vm41, %v207
  %246 = vst.msk [vmem:[%s3 + $0x58] sm:$0xff] %vm41, %v212
  %247 = vst.msk [vmem:[%s3 + $0x60] sm:$0xff] %vm41, %v217
  %248 = vst.msk [vmem:[%s3 + $0x68] sm:$0xff] %vm41, %v222
  %249 = vst.msk [vmem:[%s3 + $0x70] sm:$0xff] %vm41, %v227
  %250 = vst.msk [vmem:[%s3 + $0x78] sm:$0xff] %vm41, %v232
  // Predicated region
  $region14: #{tpu_custom_call.1} parent=0 // pred_check
    _
  $region15: #{tpu_custom_call.1} parent=0 // pred_check_branch
    %252 = sbr.rel (0) target = $region17
  $region16: #{tpu_custom_call.1} parent=0 // pred_region
    _
  $region17: #{tpu_custom_call.1} parent=0 // pred_fallthru
    _
  // Predicated region
  $region18: #{tpu_custom_call.1} parent=0 // pred_check
    _
  $region19: #{tpu_custom_call.1} parent=0 // pred_check_branch
    %254 = sbr.rel (0) target = $region21
  $region20: #{tpu_custom_call.1} parent=0 // pred_region
    _
  $region21: #{tpu_custom_call.1} parent=0 // pred_fallthru
    _

</llo_original>
